<compile_context>
chip_gen: v7x
topology: tpu7x:2x2x1
jax: 0.10.0
libtpu: 0.0.40
codegen_flags: <defaults>
</compile_context>

<pallas_src>
import math

import jax
import jax.numpy as jnp
from jax import lax
from jax.experimental import pallas as pl
from jax.experimental.pallas import tpu as pltpu


def _make_kernel(has_bias: bool, use_scratch: bool):
    """Build the tiled-matmul kernel body.

    x block: (tm, tk); w block: (tn, tk)  -- contraction on dim 1 of both
    operands (weight stays in its native (N, K) layout, no wrapper transpose).
    """

    def kernel(*refs):
        if use_scratch:
            *in_refs, o_ref, acc_ref = refs
        else:
            *in_refs, o_ref = refs
            acc_ref = o_ref          # f32 output: accumulate in place
        if has_bias:
            x_ref, w_ref, b_ref = in_refs
        else:
            x_ref, w_ref = in_refs
            b_ref = None

        kk = pl.program_id(2)

        @pl.when(kk == 0)
        def _():
            if b_ref is not None:
                # Fold the bias into the accumulator init (no final add).
                acc_ref[...] = jnp.broadcast_to(
                    b_ref[...].astype(jnp.float32), acc_ref.shape)
            else:
                acc_ref[...] = jnp.zeros_like(acc_ref)

        acc_ref[...] += lax.dot_general(
            x_ref[...], w_ref[...],
            dimension_numbers=(((1,), (1,)), ((), ())),
            preferred_element_type=jnp.float32,
        )

        if use_scratch:
            @pl.when(kk == pl.num_programs(2) - 1)
            def _():
                o_ref[...] = acc_ref[...].astype(o_ref.dtype)

    return kernel


def _sublane_align(*dtypes):
    """Sublane alignment for the second-to-last dim: 8 f32, 16 bf16, 32 int8."""
    itemsize = min(jnp.dtype(d).itemsize for d in dtypes)
    return max(8, 32 // max(1, itemsize))


def _pick_edge_tile(dim, max_tile, align):
    """M/N tile: full dim if small, else an `align`-multiple tile (ragged edge
    blocks on these axes are handled by Pallas)."""
    if dim <= max_tile:
        return dim
    return max(align, (max_tile // align) * align)


def _pick_k_tile(k, max_tile):
    """Return (tk, padded_k).  tk must divide padded_k exactly (accumulation
    correctness) and be a multiple of 128 or equal to the full K."""
    for cand in (max_tile, 512, 256, 128):
        if 0 < cand <= k and k % cand == 0:
            return cand, k
    if k <= 1024:
        return k, k              # whole-K block (block == full dim is legal)
    # Large K that is not a multiple of 128: zero-pad instead of a whole-K
    # block, which would scale the working set with K (bad on v7x's 64 MiB).
    kp = 128 * pl.cdiv(k, 128)
    for cand in (max_tile, 512, 256, 128):
        if 0 < cand <= kp and kp % cand == 0:
            return cand, kp
    return 128, kp


def _ensure_two_parallel_tiles(m, n, tm, tn):
    """v7x shards the 'parallel' grid axes across 2 TensorCores: avoid a
    degenerate 1x1 parallel grid when a dim is big enough to split."""
    if pl.cdiv(m, tm) * pl.cdiv(n, tn) >= 2:
        return tm, tn
    if n >= 512:
        return tm, 256
    if m >= 512:
        return 256, tn
    return tm, tn


def kfac_linear_forward(x, weight, bias=None, *, tile_m=512, tile_n=512,
                        tile_k=512, mxu_dtype=None):
    """Pallas implementation of KFACLinear.forward (== F.linear).

    mxu_dtype: optional dtype (e.g. jnp.bfloat16) for the MXU inputs; the f32
      accumulator and f32 bias are kept.  Default None preserves the PyTorch
      numerics exactly (weight.type_as(input)).
    """
    in_features = x.shape[-1]
    out_features = weight.shape[0]
    assert weight.shape == (out_features, in_features)

    batch_dims = x.shape[:-1]
    out_dtype = x.dtype
    x2d = x.reshape(-1, in_features)
    m, k, n = x2d.shape[0], in_features, out_features

    # PyTorch: weight.type_as(input); optionally drop inputs to bf16 for MXU
    # throughput on v6e/v7x while keeping the f32 accumulator.
    compute_dtype = jnp.dtype(mxu_dtype) if mxu_dtype is not None else jnp.dtype(out_dtype)
    if x2d.dtype != compute_dtype:
        x2d = x2d.astype(compute_dtype)
    w2d = weight if weight.dtype == compute_dtype else weight.astype(compute_dtype)

    sub = _sublane_align(compute_dtype, out_dtype)
    tm = _pick_edge_tile(m, tile_m, sub)
    tn = _pick_edge_tile(n, tile_n, 128)
    tm, tn = _ensure_two_parallel_tiles(m, n, tm, tn)
    tk, kp = _pick_k_tile(k, tile_k)
    if kp != k:
        # Zero-pad K: keeps accumulation exact and blocks VMEM-bounded.
        x2d = jnp.pad(x2d, ((0, 0), (0, kp - k)))
        w2d = jnp.pad(w2d, ((0, 0), (0, kp - k)))

    grid = (pl.cdiv(m, tm), pl.cdiv(n, tn), kp // tk)

    x_spec = pl.BlockSpec((tm, tk), lambda i, j, kk: (i, kk))
    # Weight kept in native (N, K) layout; contraction on dim 1 in-kernel.
    w_spec = pl.BlockSpec((tn, tk), lambda i, j, kk: (j, kk))
    o_spec = pl.BlockSpec((tm, tn), lambda i, j, kk: (i, j))

    use_scratch = jnp.dtype(out_dtype) != jnp.float32
    scratch = [pltpu.VMEM((tm, tn), jnp.float32)] if use_scratch else []

    in_specs = [x_spec, w_spec]
    operands = [x2d, w2d]
    if bias is not None:
        b2d = bias.reshape(1, n).astype(jnp.float32)
        in_specs.append(pl.BlockSpec((1, tn), lambda i, j, kk: (0, j)))
        operands.append(b2d)

    in_item = jnp.dtype(compute_dtype).itemsize
    out_item = jnp.dtype(out_dtype).itemsize
    # Truthful HBM traffic estimate including tile re-reads.
    bytes_accessed = (
        m * kp * in_item * pl.cdiv(n, tn)
        + n * kp * in_item * pl.cdiv(m, tm)
        + m * n * out_item
        + (n * 4 if bias is not None else 0)
    )
    cost = pl.CostEstimate(flops=2 * m * kp * n, transcendentals=0,
                           bytes_accessed=bytes_accessed)

    # Explicit VMEM limit: double-buffered blocks + scratch + headroom (the
    # 16/32 MiB defaults can be too small for 512-wide tiles).
    need = (2 * (tm * tk + tn * tk) * in_item + 2 * tm * tn * out_item
            + (tm * tn * 4 if use_scratch else 0)
            + (2 * tn * 4 if bias is not None else 0))
    vmem_limit = int(min(64 << 20, max(32 << 20, int(need * 1.5) + (8 << 20))))

    cparams = pltpu.CompilerParams(
        dimension_semantics=("parallel", "parallel", "arbitrary"),
        vmem_limit_bytes=vmem_limit,
    )

    out2d = pl.pallas_call(
        _make_kernel(bias is not None, use_scratch),
        out_shape=jax.ShapeDtypeStruct((m, n), out_dtype),
        grid_spec=pltpu.PrefetchScalarGridSpec(
            num_scalar_prefetch=0,
            grid=grid,
            in_specs=in_specs,
            out_specs=o_spec,
            scratch_shapes=scratch,
        ),
        compiler_params=cparams,
        cost_estimate=cost,
    )(*operands)

    return out2d.reshape(*batch_dims, out_features)


def init_kfac_linear_params(key, in_features, out_features, bias=True,
                            dtype=jnp.float32):
    """Deterministic init matching KFACLinear.reset_parameters().

    kaiming_uniform_(a=sqrt(5)) on an (out, in) weight => U(+-1/sqrt(fan_in));
    bias also U(+-1/sqrt(fan_in)).
    """
    kw, kb = jax.random.split(key)
    fan_in = in_features
    bound = 1.0 / math.sqrt(fan_in) if fan_in > 0 else 0.0
    weight = jax.random.uniform(
        kw, (out_features, in_features), dtype, minval=-bound, maxval=bound
    )
    b = None
    if bias:
        b = jax.random.uniform(
            kb, (out_features,), dtype, minval=-bound, maxval=bound
        )
    # TODO(synk): ema_AA / ema_GG are only updated in backward(); kept here for
    # shape parity with the PyTorch module, not used by the forward kernel.
    aug_in = in_features + 1 if bias else in_features
    ema_AA = jnp.zeros((aug_in, aug_in), dtype)
    ema_GG = jnp.zeros((out_features, out_features), dtype)
    return weight, b, ema_AA, ema_GG


if __name__ == "__main__":
    key = jax.random.PRNGKey(0)
    k_in, k_par = jax.random.split(key)

    batch, seq, in_features, out_features = 2, 8, 32, 64
    x = jax.random.normal(k_in, (batch, seq, in_features), jnp.float32)

    weight, bias, ema_AA, ema_GG = init_kfac_linear_params(
        k_par, in_features, out_features, bias=True
    )

    # Biased path.
    out = jax.block_until_ready(kfac_linear_forward(x, weight, bias))
    ref = x @ weight.T + bias
    assert out.shape == (batch, seq, out_features)
    assert jnp.allclose(out, ref, atol=1e-5, rtol=1e-5)

    # Bias-free path.
    out_nb = jax.block_until_ready(kfac_linear_forward(x, weight, None))
    assert jnp.allclose(out_nb, x @ weight.T, atol=1e-5, rtol=1e-5)

    print("KERNEL_OK")
</pallas_src>

<mosaic_0001>
module attributes {stable_mosaic.version = 11 : i64} {
  func.func @kernel(%arg0: i32, %arg1: i32, %arg2: i32, %arg3: memref<16x32xf32, #tpu.memory_space<vmem>>, %arg4: memref<64x32xf32, #tpu.memory_space<vmem>>, %arg5: memref<1x64xf32, #tpu.memory_space<vmem>>, %arg6: memref<16x64xf32, #tpu.memory_space<vmem>>) attributes {dimension_semantics = [#tpu.dimension_semantics<parallel>, #tpu.dimension_semantics<parallel>, #tpu.dimension_semantics<arbitrary>], iteration_bounds = array<i64: 1, 1, 1>, scalar_prefetch = 0 : i64, scratch_operands = 0 : i64, tpu.core_type = #tpu.core_type<tc>, window_params = [{transform_indices = @transform_0, window_bounds = array<i64: 16, 32>}, {transform_indices = @transform_1, window_bounds = array<i64: 64, 32>}, {transform_indices = @transform_2, window_bounds = array<i64: 1, 64>}, {transform_indices = @transform_3, window_bounds = array<i64: 16, 64>}]} {
    %c0_i32 = arith.constant 0 : i32
    %0 = arith.cmpi eq, %arg2, %c0_i32 : i32
    %1 = arith.extui %0 : i1 to i32
    %c0_i32_0 = arith.constant 0 : i32
    %2 = arith.cmpi ne, %1, %c0_i32_0 : i32
    scf.if %2 {
      %c0_8 = arith.constant 0 : index
      %c0_9 = arith.constant 0 : index
      %9 = vector.load %arg5[%c0_8, %c0_9] : memref<1x64xf32, #tpu.memory_space<vmem>>, vector<1x64xf32>
      %10 = vector.shape_cast %9 : vector<1x64xf32> to vector<1x64xf32>
      %11 = vector.broadcast %10 : vector<1x64xf32> to vector<16x64xf32>
      %c0_10 = arith.constant 0 : index
      %c0_11 = arith.constant 0 : index
      %12 = vector.load %arg6[%c0_10, %c0_11] : memref<16x64xf32, #tpu.memory_space<vmem>>, vector<16x64xf32>
      tpu.vector_store %arg6[%c0_10, %c0_11], %11 {strides = array<i32>} : memref<16x64xf32, #tpu.memory_space<vmem>>, vector<16x64xf32>,
    } else {
    }
    %c0 = arith.constant 0 : index
    %c0_1 = arith.constant 0 : index
    %3 = vector.load %arg6[%c0, %c0_1] : memref<16x64xf32, #tpu.memory_space<vmem>>, vector<16x64xf32>
    %c0_2 = arith.constant 0 : index
    %c0_3 = arith.constant 0 : index
    %4 = vector.load %arg3[%c0_2, %c0_3] : memref<16x32xf32, #tpu.memory_space<vmem>>, vector<16x32xf32>
    %c0_4 = arith.constant 0 : index
    %c0_5 = arith.constant 0 : index
    %5 = vector.load %arg4[%c0_4, %c0_5] : memref<64x32xf32, #tpu.memory_space<vmem>>, vector<64x32xf32>
    %cst = arith.constant dense<0.000000e+00> : vector<16x64xf32>
    %6 = tpu.matmul %4, %5, %cst {dimension_numbers = #tpu.dot_dimension_numbers<[1], [1], [0], [0], [0, 0, 1, 0], [], []>} : vector<16x32xf32>, vector<64x32xf32>, vector<16x64xf32> -> vector<16x64xf32>
    %7 = arith.addf %3, %6 : vector<16x64xf32>
    %c0_6 = arith.constant 0 : index
    %c0_7 = arith.constant 0 : index
    %8 = vector.load %arg6[%c0_6, %c0_7] : memref<16x64xf32, #tpu.memory_space<vmem>>, vector<16x64xf32>
    tpu.vector_store %arg6[%c0_6, %c0_7], %7 {strides = array<i32>} : memref<16x64xf32, #tpu.memory_space<vmem>>, vector<16x64xf32>,
    return
  }
  func.func @transform_0(%arg0: i32, %arg1: i32, %arg2: i32) -> (i32, i32) {
    %c0_i32 = arith.constant 0 : i32
    return %arg0, %arg2 : i32, i32
  }
  func.func @transform_1(%arg0: i32, %arg1: i32, %arg2: i32) -> (i32, i32) {
    %c0_i32 = arith.constant 0 : i32
    return %arg1, %arg2 : i32, i32
  }
  func.func @transform_2(%arg0: i32, %arg1: i32, %arg2: i32) -> (i32, i32) {
    %c0_i32 = arith.constant 0 : i32
    %c0_i32_0 = arith.constant 0 : i32
    return %c0_i32, %arg1 : i32, i32
  }
  func.func @transform_3(%arg0: i32, %arg1: i32, %arg2: i32) -> (i32, i32) {
    %c0_i32 = arith.constant 0 : i32
    return %arg0, %arg1 : i32, i32
  }
}

</mosaic_0001>

<llo_original>
// kernel: tpu_custom_call.1
$region0: #{tpu_custom_call.1}
  #allocation0 [shape = 'u32[]', space=smem, size = 0x4, offset = 0x4, fixed_abs, tag = 'smem constant byte address 0x4 - core index']
  #allocation1 [shape = 'u32[144,128]{1,0:T(1,128)}', space=vmem, size = 0x12000, scoped, tag = 'internal scratch']
  %s0 = inlined_call_operand.vmem [shape: f32[16,32], index: 0, kind: input, shape index: {}]
  %s1 = inlined_call_operand.vmem [shape: f32[64,32], index: 1, kind: input, shape index: {}]
  %s2 = inlined_call_operand.vmem [shape: f32[1,64], index: 2, kind: input, shape index: {}]
  %s3 = inlined_call_operand.hbm [shape: f32[16,64], index: 3, kind: output, shape index: {}]
  %s4 = sld [smem:[#allocation0]]
  $region26: #{tpu_custom_call.1} parent=0
    _
  %s6 = ssub.s32 1, %s4
  %s7 = scalar_select 0, %s6, %s4
  $region1: #{tpu_custom_call.1} parent=0
    #allocation2 [shape = 'u8[8192]{0}', space=vmem, size = 0x2000, scoped, tag = 'output window, operand 0, single buffered']
    #allocation3 [shape = 's32[1]{0}', space=sflag, size = 0x4, scoped, tag = 'scoped memory for tpu_custom_call.1']
    %8 = vsyncpa [#allocation3], 0
    // Predicated region
    $region2: #{tpu_custom_call.1} parent=1 // pred_check
      _
    $region3: #{tpu_custom_call.1} parent=1 // pred_check_branch
      %10 = sbr.rel (0) target = $region5
    $region4: #{tpu_custom_call.1} parent=1 // pred_region
      _
    $region5: #{tpu_custom_call.1} parent=1 // pred_fallthru
      _
    // Predicated region
    $region6: #{tpu_custom_call.1} parent=1 // pred_check
      _
    $region7: #{tpu_custom_call.1} parent=1 // pred_check_branch
      %12 = sbr.rel (0) target = $region9
    $region8: #{tpu_custom_call.1} parent=1 // pred_region
      _
    $region9: #{tpu_custom_call.1} parent=1 // pred_fallthru
      _
    // Predicated region
    $region10: #{tpu_custom_call.1} parent=1 // pred_check
      _
    $region11: #{tpu_custom_call.1} parent=1 // pred_check_branch
      %14 = sbr.rel (0) target = $region13
    $region12: #{tpu_custom_call.1} parent=1 // pred_region
      _
    $region13: #{tpu_custom_call.1} parent=1 // pred_fallthru
      _
    %p15 = scmp.eq.s32.totalorder 0, 0
    // Predicated region
    $region14: #{tpu_custom_call.1} parent=1 // pred_check
      %p16 = pneg %p15
    $region15: #{tpu_custom_call.1} parent=1 // pred_check_branch
      %18 = sbr.rel (%p16) target = $region17
    $region16: #{tpu_custom_call.1} parent=1 // pred_region
      %v19 = vld [vmem:[%s2] sm:$0x1]
      %v21 = vlaneseq
      %v22 = vshrl.u32 %v21, 7
      %v23 = vsub.s32 0, %v22
      %v24 = vrot.slane %v19, %v23
      %vm26 = vcmask 523264
      %27 = vst.msk [vmem:[#allocation2] sm:$0xff] %vm26, %v24
      %28 = vst.msk [vmem:[#allocation2 + $0x8] sm:$0xff] %vm26, %v24
    $region17: #{tpu_custom_call.1} parent=1 // pred_fallthru
      _
    %v29 = vld [vmem:[#allocation2] sm:$0xff]
    %v30 = vld [vmem:[#allocation2 + $0x8] sm:$0xff]
    %v31 = vld [vmem:[%s0] sm:$0xff]
    %v32 = vld [vmem:[%s0 + $0x8] sm:$0xff]
    %v33 = vld [vmem:[%s1] sm:$0xff]
    %v34 = vld [vmem:[%s1 + $0x8] sm:$0xff]
    %v35 = vld [vmem:[%s1 + $0x10] sm:$0xff]
    %v36 = vld [vmem:[%s1 + $0x18] sm:$0xff]
    %v37 = vld [vmem:[%s1 + $0x20] sm:$0xff]
    %v38 = vld [vmem:[%s1 + $0x28] sm:$0xff]
    %v39 = vld [vmem:[%s1 + $0x30] sm:$0xff]
    %v40 = vld [vmem:[%s1 + $0x38] sm:$0xff]
    %vm41 = vcmask 261120
    %v43 = vsel %vm41, %v31, 0
    %v46 = vsel %vm41, %v32, 0
    %v49 = vsel %vm41, %v33, 0
    %v52 = vsel %vm41, %v34, 0
    %v55 = vsel %vm41, %v35, 0
    %v58 = vsel %vm41, %v36, 0
    %v61 = vsel %vm41, %v37, 0
    %v64 = vsel %vm41, %v38, 0
    %v67 = vsel %vm41, %v39, 0
    %v70 = vsel %vm41, %v40, 0
    %72 = vmatprep.subr.mxu0 0.0
    %73 = vmatpush1.xpose.msra.mxu0 %v49
    %74 = vmatprep.subr.mxu0 0.0
    %75 = vmatpush1.xpose.msra.mxu0 %v52
    %76 = vmatprep.subr.mxu0 0.0
    %77 = vmatpush1.xpose.msra.mxu0 %v55
    %78 = vmatprep.subr.mxu0 0.0
    %79 = vmatpush1.xpose.msra.mxu0 %v58
    %80 = vmatprep.subr.mxu0 0.0
    %81 = vmatpush1.xpose.msra.mxu0 %v61
    %82 = vmatprep.subr.mxu0 0.0
    %83 = vmatpush1.xpose.msra.mxu0 %v64
    %84 = vmatprep.subr.mxu0 0.0
    %85 = vmatpush1.xpose.msra.mxu0 %v67
    %86 = vmatprep.subr.mxu0 0.0
    %87 = vmatpush1.xpose.msra.mxu0 %v70
    %88 = vmatprep.subr.mxu0 0.0
    %89 = vmatpush1.xpose.msra.mxu0 0.0
    %90 = vmatprep.subr.mxu0 0.0
    %91 = vmatpush1.xpose.msra.mxu0 0.0
    %92 = vmatprep.subr.mxu0 0.0
    %93 = vmatpush1.xpose.msra.mxu0 0.0
    %94 = vmatprep.subr.mxu0 0.0
    %95 = vmatpush1.xpose.msra.mxu0 0.0
    %96 = vmatprep.subr.mxu0 0.0
    %97 = vmatpush1.xpose.msra.mxu0 0.0
    %98 = vmatprep.subr.mxu0 0.0
    %99 = vmatpush1.xpose.msra.mxu0 0.0
    %100 = vmatprep.subr.mxu0 0.0
    %101 = vmatpush1.xpose.msra.mxu0 0.0
    %102 = vmatprep.subr.mxu0 0.0
    %103 = vmatpush1.xpose.msra.mxu0 0.0
    %104 = vmatprep.subr.mxu0 0.0
    %105 = vmatpush1.xpose.msra.mxu0 0.0
    %106 = vmatprep.subr.mxu0 0.0
    %107 = vmatpush1.xpose.msra.mxu0 0.0
    %108 = vmatprep.subr.mxu0 0.0
    %109 = vmatpush1.xpose.msra.mxu0 0.0
    %110 = vmatprep.subr.mxu0 0.0
    %111 = vmatpush1.xpose.msra.mxu0 0.0
    %112 = vmatprep.subr.mxu0 0.0
    %113 = vmatpush1.xpose.msra.mxu0 0.0
    %114 = vmatprep.subr.mxu0 0.0
    %115 = vmatpush1.xpose.msra.mxu0 0.0
    %116 = vmatprep.subr.mxu0 0.0
    %117 = vmatpush1.xpose.msra.mxu0 0.0
    %118 = vmatprep.subr.mxu0 0.0
    %119 = vmatpush1.xpose.msra.mxu0 0.0
    %120 = vmatprep.subr.mxu0 0.0
    %121 = vmatpush1.xpose.msra.mxu0 0.0
    %122 = vmatprep.subr.mxu0 0.0
    %123 = vmatpush1.xpose.msra.mxu0 0.0
    %124 = vmatprep.subr.mxu0 0.0
    %125 = vmatpush1.xpose.msra.mxu0 0.0
    %126 = vmatprep.subr.mxu0 0.0
    %127 = vmatpush1.xpose.msra.mxu0 0.0
    %128 = vmatprep.subr.mxu0 0.0
    %129 = vmatpush1.xpose.msra.mxu0 0.0
    %130 = vmatprep.subr.mxu0 0.0
    %131 = vmatpush1.xpose.msra.mxu0 0.0
    %132 = vmatprep.subr.mxu0 0.0
    %133 = vmatpush1.xpose.msra.mxu0 0.0
    %134 = vmatprep.subr.mxu0 0.0
    %135 = vmatpush1.xpose.msra.mxu0 0.0
    %136 = vmatprep.mubr.f32.mxu0 0.0
    %137 = vmatmul.mubr.f32.gmra.mrb[0].mxu0 %v43
    %v138 = vpop.f32.mrb[0].mxu0
    %v139 = vadd.f32 0.0, %v138
    %v140 = vpop.f32.mrb[0].mxu0
    %141 = vmatprep.mubr.f32.mxu0 0.0
    %142 = vmatmul.mubr.f32.gmra.mrb[0].mxu0 %v46
    %v143 = vpop.f32.mrb[0].mxu0
    %v144 = vadd.f32 0.0, %v143
    %v145 = vpop.f32.mrb[0].mxu0
    %146 = vdwg.mxu0
    %v147 = vadd.f32 %v29, %v139
    %v148 = vadd.f32 %v30, %v144
    %vm149 = vcmask 523264
    %150 = vst.msk [vmem:[#allocation2] sm:$0xff] %vm149, %v147
    %151 = vst.msk [vmem:[#allocation2 + $0x8] sm:$0xff] %vm149, %v148
    // Predicated region
    $region18: #{tpu_custom_call.1} parent=1 // pred_check
      _
    $region19: #{tpu_custom_call.1} parent=1 // pred_check_branch
      %153 = sbr.rel (0) target = $region21
    $region20: #{tpu_custom_call.1} parent=1 // pred_region
      %s155 = ssub.s32 256, 256
      %156 = vsyncadd [#allocation3], %s155
      %s157 = sshll.u32 [#allocation2], 4
      %s158 = int_to_ptr.vmem [resolvable:$true] %s157
      %163 = dma.vmem_to_hbm [thread:$0]  %s158, 256, %s3, [#allocation3], 128, 128, 8
    $region21: #{tpu_custom_call.1} parent=1 // pred_fallthru
      _
    // Predicated region
    $region22: #{tpu_custom_call.1} parent=1 // pred_check
      _
    $region23: #{tpu_custom_call.1} parent=1 // pred_check_branch
      %165 = sbr.rel (0) target = $region25
    $region24: #{tpu_custom_call.1} parent=1 // pred_region
      %166 = dma.done [#allocation3], 256
    $region25: #{tpu_custom_call.1} parent=1 // pred_fallthru
      _
    %167 = vsyncpa [#allocation3], 1

</llo_original>
